<compile_context>
chip_gen: v5e
topology: v5e:2x2
jax: 0.10.0
libtpu: 0.0.40
codegen_flags: <defaults>
</compile_context>

<pallas_src>
import functools

import jax
import jax.numpy as jnp
import numpy as np
from jax import lax
from jax.experimental import pallas as pl
from jax.experimental.pallas import tpu as pltpu

# Plain Python float (NOT a jnp array) so the kernel captures no traced constants.
_NEG_BIG = -1e30


def _instance_loss_kernel(zi_q_ref, zj_q_ref, zi_k_ref, zj_k_ref, out_ref,
                          zi_s_ref, zj_s_ref, m_i_ref, l_i_ref, m_j_ref, l_j_ref,
                          *, inv_temp, tile_q, tile_k):
    qi = pl.program_id(0)          # query-row tile (parallel axis)
    ks = pl.program_id(1)          # key-row tile (reduction axis, innermost)
    nk = pl.num_programs(1)

    @pl.when(ks == 0)
    def _init():
        # Pre-scale the resident query tiles by 1/temperature once per query tile.
        zi_s_ref[...] = zi_q_ref[...] * inv_temp
        zj_s_ref[...] = zj_q_ref[...] * inv_temp
        m_i_ref[...] = jnp.full_like(m_i_ref, _NEG_BIG)
        l_i_ref[...] = jnp.zeros_like(l_i_ref)
        m_j_ref[...] = jnp.full_like(m_j_ref, _NEG_BIG)
        l_j_ref[...] = jnp.zeros_like(l_j_ref)

    zi_s = zi_s_ref[...]           # (Tq, D), already scaled by 1/T
    zj_s = zj_s_ref[...]
    zi_k = zi_k_ref[...]           # (Tk, D), raw
    zj_k = zj_k_ref[...]

    # Self-similarity (diagonal) mask: single (Tq, Tk) iota compared against a
    # (Tq, 1) global-row column; off-diagonal tiles fold to an all-false mask.
    col = lax.broadcasted_iota(jnp.int32, (tile_q, tile_k), 1)
    row = (lax.broadcasted_iota(jnp.int32, (tile_q, 1), 0)
           + (qi * tile_q - ks * tile_k))
    diag = row == col

    dn = (((1,), (1,)), ((), ()))  # contract feature dim of both -> q @ k^T, no transpose

    def online_update(m_ref, l_ref, s_a, s_b):
        m_prev = m_ref[...]                                            # (Tq, 1)
        m_tile = jnp.max(jnp.maximum(s_a, s_b), axis=1, keepdims=True)
        m_new = jnp.maximum(m_prev, m_tile)
        alpha = jnp.exp(m_prev - m_new)
        p_sum = jnp.sum(jnp.exp(s_a - m_new) + jnp.exp(s_b - m_new),
                        axis=1, keepdims=True)
        l_ref[...] = alpha * l_ref[...] + p_sum
        m_ref[...] = m_new

    # i-half rows: compute and fully consume before starting the j-half so at most
    # two (Tq, Tk) f32 tiles (plus exp temporaries) are live at once.
    s_ii = lax.dot_general(zi_s, zi_k, dn, preferred_element_type=jnp.float32)
    s_ii = jnp.where(diag, _NEG_BIG, s_ii)
    s_ij = lax.dot_general(zi_s, zj_k, dn, preferred_element_type=jnp.float32)
    online_update(m_i_ref, l_i_ref, s_ii, s_ij)

    # j-half rows.
    s_jj = lax.dot_general(zj_s, zj_k, dn, preferred_element_type=jnp.float32)
    s_jj = jnp.where(diag, _NEG_BIG, s_jj)
    s_ji = lax.dot_general(zj_s, zi_k, dn, preferred_element_type=jnp.float32)
    online_update(m_j_ref, l_j_ref, s_jj, s_ji)

    @pl.when(ks == nk - 1)
    def _finalize():
        lse_i = m_i_ref[...] + jnp.log(l_i_ref[...])                  # (Tq, 1)
        lse_j = m_j_ref[...] + jnp.log(l_j_ref[...])
        # Positive logit per row: sim[i, i+B] = sim[i+B, i] = <z_i[i], z_j[i]> / T.
        # zi_s is already scaled by 1/T, zj_q is raw -> 1/T applied exactly once.
        pos = jnp.sum(zi_s.astype(jnp.float32)
                      * zj_q_ref[...].astype(jnp.float32),
                      axis=1, keepdims=True)                          # (Tq, 1)
        total = jnp.sum(lse_i + lse_j - 2.0 * pos)
        out_ref[...] = jnp.broadcast_to(total, (1, 1, 1))


def _choose_tile(b, max_tile):
    """Largest divisor of b that is a multiple of 8 and <= max_tile; falls back to
    the full half (always a legal full-extent block)."""
    if b <= max_tile:
        return b
    best = None
    for t in range(8, max_tile + 1, 8):
        if b % t == 0:
            best = t
    return best if best is not None else b


def instance_loss(z_i, z_j, temperature, *, tile_q=None, tile_k=None):
    """Pallas TPU implementation of InstanceLoss.forward(z_i, z_j)."""
    assert z_i.shape == z_j.shape and z_i.ndim == 2
    b, d = z_i.shape
    n = 2 * b

    if tile_q is None:
        # Keep the parallel query axis at >= 2 tiles where possible (v7x has 2 TCs),
        # and never exceed 128 query rows per tile (vreg / spill friendly on v5e).
        tile_q = _choose_tile(b, min(128, max(8, b // 2)))
    if tile_k is None:
        # Larger key tiles amortize the per-grid-step pipeline overhead on the
        # hot inner (ks) loop without growing the (Tq, 1) accumulators.
        tile_k = _choose_tile(b, 512)

    for t in (tile_q, tile_k):
        assert b % t == 0, "row tiles must divide the per-view batch size"
        assert t == b or t % 8 == 0, (
            "row tile must be the full half or a multiple of 8 (TPU sublane tiling)")
    nq = b // tile_q
    nk = b // tile_k

    kernel = functools.partial(
        _instance_loss_kernel,
        inv_temp=1.0 / float(temperature),
        tile_q=tile_q,
        tile_k=tile_k,
    )

    q_spec = pl.BlockSpec((tile_q, d), lambda qi, ks: (qi, 0))  # resident across ks
    k_spec = pl.BlockSpec((tile_k, d), lambda qi, ks: (ks, 0))  # streamed / pipelined

    itemsize = jnp.dtype(z_i.dtype).itemsize
    cost = pl.CostEstimate(
        flops=8 * b * b * d,                 # four Tq x D x Tk matmuls per grid step
        transcendentals=4 * b * b,           # exp over every similarity entry
        bytes_accessed=(2 * nq * b * d + 2 * b * d) * itemsize + 4 * nq,
    )

    partials = pl.pallas_call(
        kernel,
        out_shape=jax.ShapeDtypeStruct((nq, 1, 1), jnp.float32),
        grid_spec=pltpu.PrefetchScalarGridSpec(
            num_scalar_prefetch=0,
            grid=(nq, nk),
            in_specs=[q_spec, q_spec, k_spec, k_spec],
            out_specs=pl.BlockSpec((1, 1, 1), lambda qi, ks: (qi, 0, 0)),
            scratch_shapes=[
                pltpu.VMEM((tile_q, d), z_i.dtype),    # z_i query tile * 1/T
                pltpu.VMEM((tile_q, d), z_j.dtype),    # z_j query tile * 1/T
                pltpu.VMEM((tile_q, 1), jnp.float32),  # m (i-half rows)
                pltpu.VMEM((tile_q, 1), jnp.float32),  # l (i-half rows)
                pltpu.VMEM((tile_q, 1), jnp.float32),  # m (j-half rows)
                pltpu.VMEM((tile_q, 1), jnp.float32),  # l (j-half rows)
            ],
        ),
        compiler_params=pltpu.CompilerParams(
            dimension_semantics=("parallel", "arbitrary")),
        cost_estimate=cost,
    )(z_i, z_j, z_i, z_j)

    # Tiny O(B / Tq) reduction of per-query-tile partial sums; done in the wrapper so
    # the "parallel" query axis stays race-free on multi-TensorCore chips.
    return jnp.sum(partials) / jnp.float32(n)


def _reference_loss_np(z_i, z_j, temperature):
    """NumPy reference mirroring the PyTorch forward literally."""
    z_i = np.asarray(z_i, dtype=np.float64)
    z_j = np.asarray(z_j, dtype=np.float64)
    B = z_i.shape[0]
    N = 2 * B
    z = np.concatenate([z_i, z_j], axis=0)
    sim = (z @ z.T) / temperature
    sim_i_j = np.diagonal(sim, B)
    sim_j_i = np.diagonal(sim, -B)
    positive = np.concatenate([sim_i_j, sim_j_i]).reshape(N, 1)
    mask = np.ones((N, N), dtype=bool)
    np.fill_diagonal(mask, False)
    idx = np.arange(B)
    mask[idx, B + idx] = False
    mask[B + idx, idx] = False
    negative = sim[mask].reshape(N, -1)
    logits = np.concatenate([positive, negative], axis=1)     # [N, N-1]
    row_max = logits.max(axis=1, keepdims=True)
    lse = np.log(np.exp(logits - row_max).sum(axis=1)) + row_max[:, 0]
    return np.sum(lse - logits[:, 0]) / N                      # CE(sum) / N, labels = 0


if __name__ == "__main__":
    batch_size = 16
    feat_dim = 128
    temperature = 0.5

    key = jax.random.PRNGKey(0)
    k1, k2 = jax.random.split(key)
    z_i = jax.random.normal(k1, (batch_size, feat_dim), dtype=jnp.float32)
    z_j = jax.random.normal(k2, (batch_size, feat_dim), dtype=jnp.float32)
    # L2-normalize (typical contrastive embeddings; keeps f32 numerics tame).
    z_i = z_i / jnp.linalg.norm(z_i, axis=1, keepdims=True)
    z_j = z_j / jnp.linalg.norm(z_j, axis=1, keepdims=True)

    # tile_q = tile_k = 8 forces a 2x2 grid to exercise the tiled online-logsumexp path.
    loss = jax.block_until_ready(
        instance_loss(z_i, z_j, temperature, tile_q=8, tile_k=8))
    ref = _reference_loss_np(z_i, z_j, temperature)

    assert np.allclose(np.asarray(loss), ref, rtol=1e-4, atol=1e-4), (loss, ref)
    print("KERNEL_OK")
</pallas_src>

<mosaic_0001>
module attributes {stable_mosaic.version = 11 : i64} {
  func.func @_instance_loss_kernel(%arg0: i32, %arg1: i32, %arg2: memref<8x128xf32, #tpu.memory_space<vmem>>, %arg3: memref<8x128xf32, #tpu.memory_space<vmem>>, %arg4: memref<8x128xf32, #tpu.memory_space<vmem>>, %arg5: memref<8x128xf32, #tpu.memory_space<vmem>>, %arg6: memref<1x1x1xf32, #tpu.memory_space<vmem>>, %arg7: memref<8x128xf32, #tpu.memory_space<vmem>>, %arg8: memref<8x128xf32, #tpu.memory_space<vmem>>, %arg9: memref<8x1xf32, #tpu.memory_space<vmem>>, %arg10: memref<8x1xf32, #tpu.memory_space<vmem>>, %arg11: memref<8x1xf32, #tpu.memory_space<vmem>>, %arg12: memref<8x1xf32, #tpu.memory_space<vmem>>) attributes {dimension_semantics = [#tpu.dimension_semantics<parallel>, #tpu.dimension_semantics<arbitrary>], iteration_bounds = array<i64: 2, 2>, scalar_prefetch = 0 : i64, scratch_operands = 6 : i64, tpu.core_type = #tpu.core_type<tc>, window_params = [{transform_indices = @transform_0, window_bounds = array<i64: 8, 128>}, {transform_indices = @transform_1, window_bounds = array<i64: 8, 128>}, {transform_indices = @transform_2, window_bounds = array<i64: 8, 128>}, {transform_indices = @transform_3, window_bounds = array<i64: 8, 128>}, {transform_indices = @transform_4, window_bounds = array<i64: 1, 1, 1>}]} {
    %c0_i32 = arith.constant 0 : i32
    %0 = arith.cmpi eq, %arg1, %c0_i32 : i32
    %1 = arith.extui %0 : i1 to i32
    %c0_i32_0 = arith.constant 0 : i32
    %2 = arith.cmpi ne, %1, %c0_i32_0 : i32
    scf.if %2 {
      %c0_35 = arith.constant 0 : index
      %c0_36 = arith.constant 0 : index
      %69 = vector.load %arg2[%c0_35, %c0_36] : memref<8x128xf32, #tpu.memory_space<vmem>>, vector<8x128xf32>
      %cst_37 = arith.constant 2.000000e+00 : f32
      %70 = vector.broadcast %cst_37 : f32 to vector<8x128xf32>
      %71 = arith.mulf %69, %70 : vector<8x128xf32>
      %c0_38 = arith.constant 0 : index
      %c0_39 = arith.constant 0 : index
      %72 = vector.load %arg7[%c0_38, %c0_39] : memref<8x128xf32, #tpu.memory_space<vmem>>, vector<8x128xf32>
      tpu.vector_store %arg7[%c0_38, %c0_39], %71 {strides = array<i32>} : memref<8x128xf32, #tpu.memory_space<vmem>>, vector<8x128xf32>,
      %c0_40 = arith.constant 0 : index
      %c0_41 = arith.constant 0 : index
      %73 = vector.load %arg3[%c0_40, %c0_41] : memref<8x128xf32, #tpu.memory_space<vmem>>, vector<8x128xf32>
      %cst_42 = arith.constant 2.000000e+00 : f32
      %74 = vector.broadcast %cst_42 : f32 to vector<8x128xf32>
      %75 = arith.mulf %73, %74 : vector<8x128xf32>
      %c0_43 = arith.constant 0 : index
      %c0_44 = arith.constant 0 : index
      %76 = vector.load %arg8[%c0_43, %c0_44] : memref<8x128xf32, #tpu.memory_space<vmem>>, vector<8x128xf32>
      tpu.vector_store %arg8[%c0_43, %c0_44], %75 {strides = array<i32>} : memref<8x128xf32, #tpu.memory_space<vmem>>, vector<8x128xf32>,
      %cst_45 = arith.constant -1.000000e+30 : f32
      %77 = vector.broadcast %cst_45 : f32 to vector<8x1xf32>
      %c0_46 = arith.constant 0 : index
      %c0_47 = arith.constant 0 : index
      %78 = vector.load %arg9[%c0_46, %c0_47] : memref<8x1xf32, #tpu.memory_space<vmem>>, vector<8x1xf32>
      tpu.vector_store %arg9[%c0_46, %c0_47], %77 {strides = array<i32>} : memref<8x1xf32, #tpu.memory_space<vmem>>, vector<8x1xf32>,
      %cst_48 = arith.constant 0.000000e+00 : f32
      %79 = vector.broadcast %cst_48 : f32 to vector<8x1xf32>
      %c0_49 = arith.constant 0 : index
      %c0_50 = arith.constant 0 : index
      %80 = vector.load %arg10[%c0_49, %c0_50] : memref<8x1xf32, #tpu.memory_space<vmem>>, vector<8x1xf32>
      tpu.vector_store %arg10[%c0_49, %c0_50], %79 {strides = array<i32>} : memref<8x1xf32, #tpu.memory_space<vmem>>, vector<8x1xf32>,
      %cst_51 = arith.constant -1.000000e+30 : f32
      %81 = vector.broadcast %cst_51 : f32 to vector<8x1xf32>
      %c0_52 = arith.constant 0 : index
      %c0_53 = arith.constant 0 : index
      %82 = vector.load %arg11[%c0_52, %c0_53] : memref<8x1xf32, #tpu.memory_space<vmem>>, vector<8x1xf32>
      tpu.vector_store %arg11[%c0_52, %c0_53], %81 {strides = array<i32>} : memref<8x1xf32, #tpu.memory_space<vmem>>, vector<8x1xf32>,
      %cst_54 = arith.constant 0.000000e+00 : f32
      %83 = vector.broadcast %cst_54 : f32 to vector<8x1xf32>
      %c0_55 = arith.constant 0 : index
      %c0_56 = arith.constant 0 : index
      %84 = vector.load %arg12[%c0_55, %c0_56] : memref<8x1xf32, #tpu.memory_space<vmem>>, vector<8x1xf32>
      tpu.vector_store %arg12[%c0_55, %c0_56], %83 {strides = array<i32>} : memref<8x1xf32, #tpu.memory_space<vmem>>, vector<8x1xf32>,
    } else {
    }
    %c0 = arith.constant 0 : index
    %c0_1 = arith.constant 0 : index
    %3 = vector.load %arg7[%c0, %c0_1] : memref<8x128xf32, #tpu.memory_space<vmem>>, vector<8x128xf32>
    %c0_2 = arith.constant 0 : index
    %c0_3 = arith.constant 0 : index
    %4 = vector.load %arg8[%c0_2, %c0_3] : memref<8x128xf32, #tpu.memory_space<vmem>>, vector<8x128xf32>
    %c0_4 = arith.constant 0 : index
    %c0_5 = arith.constant 0 : index
    %5 = vector.load %arg4[%c0_4, %c0_5] : memref<8x128xf32, #tpu.memory_space<vmem>>, vector<8x128xf32>
    %c0_6 = arith.constant 0 : index
    %c0_7 = arith.constant 0 : index
    %6 = vector.load %arg5[%c0_6, %c0_7] : memref<8x128xf32, #tpu.memory_space<vmem>>, vector<8x128xf32>
    %7 = tpu.iota {dimensions = array<i32: 1>} : vector<8x8xi32>
    %8 = tpu.iota {dimensions = array<i32: 0>} : vector<8x1xi32>
    %c8_i32 = arith.constant 8 : i32
    %9 = arith.muli %arg0, %c8_i32 : i32
    %c8_i32_8 = arith.constant 8 : i32
    %10 = arith.muli %arg1, %c8_i32_8 : i32
    %11 = arith.subi %9, %10 : i32
    %12 = vector.broadcast %11 : i32 to vector<8x1xi32>
    %13 = arith.addi %8, %12 : vector<8x1xi32>
    %14 = vector.broadcast %13 : vector<8x1xi32> to vector<8x8xi32>
    %15 = arith.cmpi eq, %14, %7 : vector<8x8xi32>
    %cst = arith.constant dense<0.000000e+00> : vector<8x8xf32>
    %16 = tpu.matmul %3, %5, %cst {dimension_numbers = #tpu.dot_dimension_numbers<[1], [1], [0], [0], [0, 0, 1, 0], [], []>} : vector<8x128xf32>, vector<8x128xf32>, vector<8x8xf32> -> vector<8x8xf32>
    %cst_9 = arith.constant -1.000000e+30 : f32
    %17 = vector.broadcast %cst_9 : f32 to vector<8x8xf32>
    %18 = arith.select %15, %17, %16 : vector<8x8xi1>, vector<8x8xf32>
    %cst_10 = arith.constant dense<0.000000e+00> : vector<8x8xf32>
    %19 = tpu.matmul %3, %6, %cst_10 {dimension_numbers = #tpu.dot_dimension_numbers<[1], [1], [0], [0], [0, 0, 1, 0], [], []>} : vector<8x128xf32>, vector<8x128xf32>, vector<8x8xf32> -> vector<8x8xf32>
    %c0_11 = arith.constant 0 : index
    %c0_12 = arith.constant 0 : index
    %20 = vector.load %arg9[%c0_11, %c0_12] : memref<8x1xf32, #tpu.memory_space<vmem>>, vector<8x1xf32>
    %21 = arith.maximumf %18, %19 : vector<8x8xf32>
    %cst_13 = arith.constant dense<0xFF800000> : vector<8xf32>
    %22 = vector.multi_reduction <maximumf>, %21, %cst_13 [1] : vector<8x8xf32> to vector<8xf32>
    %23 = vector.shape_cast %22 : vector<8xf32> to vector<8x1xf32>
    %24 = arith.maximumf %20, %23 : vector<8x1xf32>
    %25 = arith.subf %20, %24 : vector<8x1xf32>
    %26 = math.exp %25 : vector<8x1xf32>
    %27 = vector.broadcast %24 : vector<8x1xf32> to vector<8x8xf32>
    %28 = arith.subf %18, %27 : vector<8x8xf32>
    %29 = math.exp %28 : vector<8x8xf32>
    %30 = vector.broadcast %24 : vector<8x1xf32> to vector<8x8xf32>
    %31 = arith.subf %19, %30 : vector<8x8xf32>
    %32 = math.exp %31 : vector<8x8xf32>
    %33 = arith.addf %29, %32 : vector<8x8xf32>
    %cst_14 = arith.constant dense<0.000000e+00> : vector<8xf32>
    %34 = vector.multi_reduction <add>, %33, %cst_14 [1] : vector<8x8xf32> to vector<8xf32>
    %35 = vector.shape_cast %34 : vector<8xf32> to vector<8x1xf32>
    %c0_15 = arith.constant 0 : index
    %c0_16 = arith.constant 0 : index
    %36 = vector.load %arg10[%c0_15, %c0_16] : memref<8x1xf32, #tpu.memory_space<vmem>>, vector<8x1xf32>
    %37 = arith.mulf %26, %36 : vector<8x1xf32>
    %38 = arith.addf %37, %35 : vector<8x1xf32>
    %c0_17 = arith.constant 0 : index
    %c0_18 = arith.constant 0 : index
    %39 = vector.load %arg10[%c0_17, %c0_18] : memref<8x1xf32, #tpu.memory_space<vmem>>, vector<8x1xf32>
    tpu.vector_store %arg10[%c0_17, %c0_18], %38 {strides = array<i32>} : memref<8x1xf32, #tpu.memory_space<vmem>>, vector<8x1xf32>,
    %c0_19 = arith.constant 0 : index
    %c0_20 = arith.constant 0 : index
    %40 = vector.load %arg9[%c0_19, %c0_20] : memref<8x1xf32, #tpu.memory_space<vmem>>, vector<8x1xf32>
    tpu.vector_store %arg9[%c0_19, %c0_20], %24 {strides = array<i32>} : memref<8x1xf32, #tpu.memory_space<vmem>>, vector<8x1xf32>,
    %cst_21 = arith.constant dense<0.000000e+00> : vector<8x8xf32>
    %41 = tpu.matmul %4, %6, %cst_21 {dimension_numbers = #tpu.dot_dimension_numbers<[1], [1], [0], [0], [0, 0, 1, 0], [], []>} : vector<8x128xf32>, vector<8x128xf32>, vector<8x8xf32> -> vector<8x8xf32>
    %cst_22 = arith.constant -1.000000e+30 : f32
    %42 = vector.broadcast %cst_22 : f32 to vector<8x8xf32>
    %43 = arith.select %15, %42, %41 : vector<8x8xi1>, vector<8x8xf32>
    %cst_23 = arith.constant dense<0.000000e+00> : vector<8x8xf32>
    %44 = tpu.matmul %4, %5, %cst_23 {dimension_numbers = #tpu.dot_dimension_numbers<[1], [1], [0], [0], [0, 0, 1, 0], [], []>} : vector<8x128xf32>, vector<8x128xf32>, vector<8x8xf32> -> vector<8x8xf32>
    %c0_24 = arith.constant 0 : index
    %c0_25 = arith.constant 0 : index
    %45 = vector.load %arg11[%c0_24, %c0_25] : memref<8x1xf32, #tpu.memory_space<vmem>>, vector<8x1xf32>
    %46 = arith.maximumf %43, %44 : vector<8x8xf32>
    %cst_26 = arith.constant dense<0xFF800000> : vector<8xf32>
    %47 = vector.multi_reduction <maximumf>, %46, %cst_26 [1] : vector<8x8xf32> to vector<8xf32>
    %48 = vector.shape_cast %47 : vector<8xf32> to vector<8x1xf32>
    %49 = arith.maximumf %45, %48 : vector<8x1xf32>
    %50 = arith.subf %45, %49 : vector<8x1xf32>
    %51 = math.exp %50 : vector<8x1xf32>
    %52 = vector.broadcast %49 : vector<8x1xf32> to vector<8x8xf32>
    %53 = arith.subf %43, %52 : vector<8x8xf32>
    %54 = math.exp %53 : vector<8x8xf32>
    %55 = vector.broadcast %49 : vector<8x1xf32> to vector<8x8xf32>
    %56 = arith.subf %44, %55 : vector<8x8xf32>
    %57 = math.exp %56 : vector<8x8xf32>
    %58 = arith.addf %54, %57 : vector<8x8xf32>
    %cst_27 = arith.constant dense<0.000000e+00> : vector<8xf32>
    %59 = vector.multi_reduction <add>, %58, %cst_27 [1] : vector<8x8xf32> to vector<8xf32>
    %60 = vector.shape_cast %59 : vector<8xf32> to vector<8x1xf32>
    %c0_28 = arith.constant 0 : index
    %c0_29 = arith.constant 0 : index
    %61 = vector.load %arg12[%c0_28, %c0_29] : memref<8x1xf32, #tpu.memory_space<vmem>>, vector<8x1xf32>
    %62 = arith.mulf %51, %61 : vector<8x1xf32>
    %63 = arith.addf %62, %60 : vector<8x1xf32>
    %c0_30 = arith.constant 0 : index
    %c0_31 = arith.constant 0 : index
    %64 = vector.load %arg12[%c0_30, %c0_31] : memref<8x1xf32, #tpu.memory_space<vmem>>, vector<8x1xf32>
    tpu.vector_store %arg12[%c0_30, %c0_31], %63 {strides = array<i32>} : memref<8x1xf32, #tpu.memory_space<vmem>>, vector<8x1xf32>,
    %c0_32 = arith.constant 0 : index
    %c0_33 = arith.constant 0 : index
    %65 = vector.load %arg11[%c0_32, %c0_33] : memref<8x1xf32, #tpu.memory_space<vmem>>, vector<8x1xf32>
    tpu.vector_store %arg11[%c0_32, %c0_33], %49 {strides = array<i32>} : memref<8x1xf32, #tpu.memory_space<vmem>>, vector<8x1xf32>,
    %c1_i32 = arith.constant 1 : i32
    %66 = arith.cmpi eq, %arg1, %c1_i32 : i32
    %67 = arith.extui %66 : i1 to i32
    %c0_i32_34 = arith.constant 0 : i32
    %68 = arith.cmpi ne, %67, %c0_i32_34 : i32
    scf.if %68 {
      %c0_35 = arith.constant 0 : index
      %c0_36 = arith.constant 0 : index
      %69 = vector.load %arg9[%c0_35, %c0_36] : memref<8x1xf32, #tpu.memory_space<vmem>>, vector<8x1xf32>
      %c0_37 = arith.constant 0 : index
      %c0_38 = arith.constant 0 : index
      %70 = vector.load %arg10[%c0_37, %c0_38] : memref<8x1xf32, #tpu.memory_space<vmem>>, vector<8x1xf32>
      %71 = math.log %70 : vector<8x1xf32>
      %72 = arith.addf %69, %71 : vector<8x1xf32>
      %c0_39 = arith.constant 0 : index
      %c0_40 = arith.constant 0 : index
      %73 = vector.load %arg11[%c0_39, %c0_40] : memref<8x1xf32, #tpu.memory_space<vmem>>, vector<8x1xf32>
      %c0_41 = arith.constant 0 : index
      %c0_42 = arith.constant 0 : index
      %74 = vector.load %arg12[%c0_41, %c0_42] : memref<8x1xf32, #tpu.memory_space<vmem>>, vector<8x1xf32>
      %75 = math.log %74 : vector<8x1xf32>
      %76 = arith.addf %73, %75 : vector<8x1xf32>
      %c0_43 = arith.constant 0 : index
      %c0_44 = arith.constant 0 : index
      %77 = vector.load %arg3[%c0_43, %c0_44] : memref<8x128xf32, #tpu.memory_space<vmem>>, vector<8x128xf32>
      %78 = arith.mulf %3, %77 : vector<8x128xf32>
      %cst_45 = arith.constant dense<0.000000e+00> : vector<8xf32>
      %79 = vector.multi_reduction <add>, %78, %cst_45 [1] : vector<8x128xf32> to vector<8xf32>
      %80 = vector.shape_cast %79 : vector<8xf32> to vector<8x1xf32>
      %81 = arith.addf %72, %76 : vector<8x1xf32>
      %cst_46 = arith.constant 2.000000e+00 : f32
      %82 = vector.broadcast %cst_46 : f32 to vector<8x1xf32>
      %83 = arith.mulf %82, %80 : vector<8x1xf32>
      %84 = arith.subf %81, %83 : vector<8x1xf32>
      %85 = vector.shape_cast %84 : vector<8x1xf32> to vector<1x8x1xf32>
      %cst_47 = arith.constant dense<0.000000e+00> : vector<1xf32>
      %86 = vector.multi_reduction <add>, %85, %cst_47 [1, 2] : vector<1x8x1xf32> to vector<1xf32>
      %87 = vector.shape_cast %86 : vector<1xf32> to vector<1x1x1xf32>
      %88 = vector.extract %87[0, 0, 0] : f32 from vector<1x1x1xf32>
      %89 = vector.broadcast %88 : f32 to vector<1x1x1xf32>
      %c0_48 = arith.constant 0 : index
      %c0_49 = arith.constant 0 : index
      %c0_50 = arith.constant 0 : index
      %90 = vector.load %arg6[%c0_48, %c0_49, %c0_50] : memref<1x1x1xf32, #tpu.memory_space<vmem>>, vector<1x1x1xf32>
      tpu.vector_store %arg6[%c0_48, %c0_49, %c0_50], %89 {strides = array<i32>} : memref<1x1x1xf32, #tpu.memory_space<vmem>>, vector<1x1x1xf32>,
    } else {
    }
    return
  }
  func.func @transform_0(%arg0: i32, %arg1: i32) -> (i32, i32) {
    %c0_i32 = arith.constant 0 : i32
    %c0_i32_0 = arith.constant 0 : i32
    return %arg0, %c0_i32 : i32, i32
  }
  func.func @transform_1(%arg0: i32, %arg1: i32) -> (i32, i32) {
    %c0_i32 = arith.constant 0 : i32
    %c0_i32_0 = arith.constant 0 : i32
    return %arg0, %c0_i32 : i32, i32
  }
  func.func @transform_2(%arg0: i32, %arg1: i32) -> (i32, i32) {
    %c0_i32 = arith.constant 0 : i32
    %c0_i32_0 = arith.constant 0 : i32
    return %arg1, %c0_i32 : i32, i32
  }
  func.func @transform_3(%arg0: i32, %arg1: i32) -> (i32, i32) {
    %c0_i32 = arith.constant 0 : i32
    %c0_i32_0 = arith.constant 0 : i32
    return %arg1, %c0_i32 : i32, i32
  }
  func.func @transform_4(%arg0: i32, %arg1: i32) -> (i32, i32, i32) {
    %c0_i32 = arith.constant 0 : i32
    %c0_i32_0 = arith.constant 0 : i32
    %c0_i32_1 = arith.constant 0 : i32
    return %arg0, %c0_i32, %c0_i32_0 : i32, i32, i32
  }
}

</mosaic_0001>

<llo_original>
// kernel: tpu_custom_call.1
$region0: #{tpu_custom_call.1}
  #allocation0 [shape = 'u32[]', space=smem, size = 0x4, offset = 0x4, fixed_abs, tag = 'smem constant byte address 0x4 - core index']
  #allocation1 [shape = 'u32[72,128]{1,0:T(1,128)}', space=vmem, size = 0x9000, scoped, tag = 'internal scratch']
  #allocation2 [shape = 'f32[8,128]{1,0:T(8,128)}', space=vmem, size = 0x1000, scoped, tag = 'scratch operand']
  #allocation3 [shape = 'f32[8,128]{1,0:T(8,128)}', space=vmem, size = 0x1000, scoped, tag = 'scratch operand']
  #allocation4 [shape = 'f32[8,1]{1,0:T(8,128)}', space=vmem, size = 0x1000, scoped, tag = 'scratch operand']
  #allocation5 [shape = 'f32[8,1]{1,0:T(8,128)}', space=vmem, size = 0x1000, scoped, tag = 'scratch operand']
  #allocation6 [shape = 'f32[8,1]{1,0:T(8,128)}', space=vmem, size = 0x1000, scoped, tag = 'scratch operand']
  #allocation7 [shape = 'f32[8,1]{1,0:T(8,128)}', space=vmem, size = 0x1000, scoped, tag = 'scratch operand']
  %s0 = inlined_call_operand.hbm [shape: f32[16,128], index: 0, kind: input, shape index: {}]
  %s1 = inlined_call_operand.hbm [shape: f32[16,128], index: 1, kind: input, shape index: {}]
  %s2 = inlined_call_operand.hbm [shape: f32[16,128], index: 2, kind: input, shape index: {}]
  %s3 = inlined_call_operand.hbm [shape: f32[16,128], index: 3, kind: input, shape index: {}]
  %s4 = inlined_call_operand.vmem [shape: f32[2,1,1], index: 4, kind: output, shape index: {}]
  %s5 = sld [smem:[#allocation0]]
  $region73: #{tpu_custom_call.1} parent=0
    _
  %s7 = ssub.s32 1, %s5
  %s8 = scalar_select 0, %s7, %s5
  $region1: #{tpu_custom_call.1} parent=0
    #allocation8 [shape = 'u8[8192]{0}', space=vmem, size = 0x2000, scoped, tag = 'input window, operand 0']
    #allocation9 [shape = 's32[2]{0}', space=sflag, size = 0x8, scoped, tag = 'scoped memory for tpu_custom_call.1']
    #allocation10 [shape = 'u8[8192]{0}', space=vmem, size = 0x2000, scoped, tag = 'input window, operand 1']
    #allocation11 [shape = 's32[2]{0}', space=sflag, size = 0x8, scoped, tag = 'scoped memory for tpu_custom_call.1']
    #allocation12 [shape = 'u8[8192]{0}', space=vmem, size = 0x2000, scoped, tag = 'input window, operand 2']
    #allocation13 [shape = 'u8[8192]{0}', space=vmem, size = 0x2000, scoped, tag = 'input window, operand 3']
    #allocation14 [shape = 's32[2]{0}', space=sflag, size = 0x8, scoped, tag = 'scoped memory for tpu_custom_call.1']
    %9 = vsyncpa [#allocation9], 0
    %s10 = scalar_lea.sflag [#allocation9], 1
    %11 = vsyncpa %s10, 0
    %12 = vsyncpa [#allocation11], 0
    %s13 = scalar_lea.sflag [#allocation11], 1
    %14 = vsyncpa %s13, 0
    %15 = vsyncpa [#allocation14], 0
    %s16 = scalar_lea.sflag [#allocation14], 1
    %17 = vsyncpa %s16, 0
    loop: start=0, step=1, limit=6
    $region2: #{tpu_custom_call.1} parent=1 // loop_pre_header
      _
    $region3: #{tpu_custom_call.1} parent=1 // loop_header
      %s19 = sphi 0, %s23
      %p20 = scmp.ge.s32.totalorder %s19, 6
      %s26 = sphi 0, %s38
      %s27 = sphi 0, %s34
      %s28 = sphi 0, %s26
      %s29 = sphi 0, %s27
      %s30 = sphi 0, %s28
      %s31 = sphi 0, %s29
      %s41 = sphi 0, %s43
      %s44 = sphi 0, %s41
      %s45 = sphi 0, %s44
      %s61 = sphi 0, %s45
      %s67 = sphi 0, %s69
      %s70 = sphi 0, %s67
      %s71 = sphi 0, %s70
      %s87 = sphi 0, %s71
      %s93 = sphi 0, %s95
      %s96 = sphi 0, %s93
      %s97 = sphi 0, %s96
      %s113 = sphi 0, %s97
      %s119 = sphi 0, %s121
      %s122 = sphi 0, %s119
      %s123 = sphi 0, %s122
      %s139 = sphi 0, %s123
      %s145 = sphi 0, %s147
      %s148 = sphi 0, %s145
      %s149 = sphi 0, %s148
      %s165 = sphi 0, %s149
    $region4: #{tpu_custom_call.1} parent=1 // loop_header_branch
      %22 = sbr.rel (%p20) target = $region8
    $region5: #{tpu_custom_call.1} parent=1 // loop_body
      %s24 = ssub.s32 %s19, 1
      %s25 = ssub.s32 %s19, 2
      %s32 = sadd.s32 1, %s27
      %p33 = scmp.ge.s32.totalorder %s32, 2
      %s34 = scalar_select %p33, 0, %s32
      %s35 = sadd.s32 1, %s26
      %s36 = scalar_select %p33, %s35, %s26
      %p37 = scmp.ge.s32.totalorder %s36, 2
      %s38 = scalar_select %p37, 0, %s36
      %s39 = ssub.s32 %s26, %s38
      %p40 = scmp.eq.s32.totalorder %s39, 0
      %s42 = sadd.s32 %s41, 1
      %s43 = scalar_select %p40, %s41, %s42
      %p46 = pneg %p40
      %p47 = scmp.eq.s32.totalorder %s19, 3
      %p48 = por %p46, %p47
      %p49 = scmp.ne.s32.totalorder %s41, %s44
      %p50 = scmp.eq.s32.totalorder %s19, 0
      %p51 = por %p49, %p50
      %p52 = scmp.ne.s32.totalorder %s41, %s44
      %p53 = scmp.eq.s32.totalorder %s24, 3
      %p54 = por %p52, %p53
      %p55 = scmp.ne.s32.totalorder %s44, %s45
      %p56 = scmp.eq.s32.totalorder %s24, 0
      %p57 = por %p55, %p56
      %p58 = scmp.ne.s32.totalorder %s44, %s45
      %p59 = scmp.eq.s32.totalorder %s25, 3
      %p60 = por %p58, %p59
      %p62 = scmp.ne.s32.totalorder %s45, %s61
      %p63 = scmp.eq.s32.totalorder %s25, 0
      %p64 = por %p62, %p63
      %s65 = ssub.s32 %s26, %s38
      %p66 = scmp.eq.s32.totalorder %s65, 0
      %s68 = sadd.s32 %s67, 1
      %s69 = scalar_select %p66, %s67, %s68
      %p72 = pneg %p66
      %p73 = scmp.eq.s32.totalorder %s19, 3
      %p74 = por %p72, %p73
      %p75 = scmp.ne.s32.totalorder %s67, %s70
      %p76 = scmp.eq.s32.totalorder %s19, 0
      %p77 = por %p75, %p76
      %p78 = scmp.ne.s32.totalorder %s67, %s70
      %p79 = scmp.eq.s32.totalorder %s24, 3
      %p80 = por %p78, %p79
      %p81 = scmp.ne.s32.totalorder %s70, %s71
      %p82 = scmp.eq.s32.totalorder %s24, 0
      %p83 = por %p81, %p82
      %p84 = scmp.ne.s32.totalorder %s70, %s71
      %p85 = scmp.eq.s32.totalorder %s25, 3
      %p86 = por %p84, %p85
      %p88 = scmp.ne.s32.totalorder %s71, %s87
      %p89 = scmp.eq.s32.totalorder %s25, 0
      %p90 = por %p88, %p89
      %s91 = ssub.s32 %s27, %s34
      %p92 = scmp.eq.s32.totalorder %s91, 0
      %s94 = sadd.s32 %s93, 1
      %s95 = scalar_select %p92, %s93, %s94
      %p98 = pneg %p92
      %p99 = scmp.eq.s32.totalorder %s19, 3
      %p100 = por %p98, %p99
      %p101 = scmp.ne.s32.totalorder %s93, %s96
      %p102 = scmp.eq.s32.totalorder %s19, 0
      %p103 = por %p101, %p102
      %p104 = scmp.ne.s32.totalorder %s93, %s96
      %p105 = scmp.eq.s32.totalorder %s24, 3
      %p106 = por %p104, %p105
      %p107 = scmp.ne.s32.totalorder %s96, %s97
      %p108 = scmp.eq.s32.totalorder %s24, 0
      %p109 = por %p107, %p108
      %p110 = scmp.ne.s32.totalorder %s96, %s97
      %p111 = scmp.eq.s32.totalorder %s25, 3
      %p112 = por %p110, %p111
      %p114 = scmp.ne.s32.totalorder %s97, %s113
      %p115 = scmp.eq.s32.totalorder %s25, 0
      %p116 = por %p114, %p115
      %s117 = ssub.s32 %s27, %s34
      %p118 = scmp.eq.s32.totalorder %s117, 0
      %s120 = sadd.s32 %s119, 1
      %s121 = scalar_select %p118, %s119, %s120
      %p124 = pneg %p118
      %p125 = scmp.eq.s32.totalorder %s19, 3
      %p126 = por %p124, %p125
      %p127 = scmp.ne.s32.totalorder %s119, %s122
      %p128 = scmp.eq.s32.totalorder %s19, 0
      %p129 = por %p127, %p128
      %p130 = scmp.ne.s32.totalorder %s119, %s122
      %p131 = scmp.eq.s32.totalorder %s24, 3
      %p132 = por %p130, %p131
      %p133 = scmp.ne.s32.totalorder %s122, %s123
      %p134 = scmp.eq.s32.totalorder %s24, 0
      %p135 = por %p133, %p134
      %p136 = scmp.ne.s32.totalorder %s122, %s123
      %p137 = scmp.eq.s32.totalorder %s25, 3
      %p138 = por %p136, %p137
      %p140 = scmp.ne.s32.totalorder %s123, %s139
      %p141 = scmp.eq.s32.totalorder %s25, 0
      %p142 = por %p140, %p141
      %s143 = ssub.s32 %s26, %s38
      %p144 = scmp.eq.s32.totalorder %s143, 0
      %s146 = sadd.s32 %s145, 1
      %s147 = scalar_select %p144, %s145, %s146
      %p150 = pneg %p144
      %p151 = scmp.eq.s32.totalorder %s19, 3
      %p152 = por %p150, %p151
      %p153 = scmp.ne.s32.totalorder %s145, %s148
      %p154 = scmp.eq.s32.totalorder %s19, 0
      %p155 = por %p153, %p154
      %p156 = scmp.ne.s32.totalorder %s145, %s148
      %p157 = scmp.eq.s32.totalorder %s24, 3
      %p158 = por %p156, %p157
      %p159 = scmp.ne.s32.totalorder %s148, %s149
      %p160 = scmp.eq.s32.totalorder %s24, 0
      %p161 = por %p159, %p160
      %p162 = scmp.ne.s32.totalorder %s148, %s149
      %p163 = scmp.eq.s32.totalorder %s25, 3
      %p164 = por %p162, %p163
      %p166 = scmp.ne.s32.totalorder %s149, %s165
      %p167 = scmp.eq.s32.totalorder %s25, 0
      %p168 = por %p166, %p167
      %p169 = scmp.le.s32.totalorder 1, %s19
      %p170 = scmp.lt.s32.totalorder %s19, 5
      %p171 = pnand %p169, %p170
      %p172 = pneg %p171
      // Predicated region
      $region9: #{tpu_custom_call.1} parent=5 // pred_check
        _
      $region10: #{tpu_custom_call.1} parent=5 // pred_check_branch
        %174 = sbr.rel (%p171) target = $region12
      $region11: #{tpu_custom_call.1} parent=5 // pred_region
        %s175 = ssub.s32 %s19, 1
      $region12: #{tpu_custom_call.1} parent=5 // pred_fallthru
        _
      %p176 = scmp.lt.s32.totalorder %s19, 4
      // Predicated region
      $region13: #{tpu_custom_call.1} parent=5 // pred_check
        %p177 = pneg %p176
      $region14: #{tpu_custom_call.1} parent=5 // pred_check_branch
        %179 = sbr.rel (%p177) target = $region16
      $region15: #{tpu_custom_call.1} parent=5 // pred_region
        // Predicated region
        $region17: #{tpu_custom_call.1} parent=15 // pred_check
          %p180 = pneg %p51
        $region18: #{tpu_custom_call.1} parent=15 // pred_check_branch
          %182 = sbr.rel (%p180) target = $region20
        $region19: #{tpu_custom_call.1} parent=15 // pred_region
          %s183 = sand.u32 %s41, 1
          %s184 = scalar_lea.sflag [#allocation9], %s183
          %s185 = sand.u32 %s41, 1
          %s186 = smul.addr %s185, 8
          %s187 = scalar_lea.vmem [#allocation8], %s186
          %189 = vsyncadd %s184, 0
          %s190 = smul.addr %s26, 8
          %s191 = scalar_lea.hbm %s0, %s190
          %s193 = sshll.u32 %s191, 4
          %s194 = int_to_ptr.hbm [resolvable:$true] %s193
          %s195 = sshll.u32 %s187, 4
          %s196 = int_to_ptr.vmem [resolvable:$true] %s195
          %198 = dma.hbm_to_vmem [thread:$0]  %s194, 128, %s196, %s184
        $region20: #{tpu_custom_call.1} parent=15 // pred_fallthru
          _
        // Predicated region
        $region21: #{tpu_custom_call.1} parent=15 // pred_check
          %p199 = pneg %p77
        $region22: #{tpu_custom_call.1} parent=15 // pred_check_branch
          %201 = sbr.rel (%p199) target = $region24
        $region23: #{tpu_custom_call.1} parent=15 // pred_region
          %s202 = sand.u32 %s19, 1
          %s203 = scalar_lea.sflag [#allocation11], %s202
          %s204 = sand.u32 %s67, 1
          %s205 = smul.addr %s204, 8
          %s206 = scalar_lea.vmem [#allocation10], %s205
          %208 = vsyncadd %s203, 0
          %s209 = smul.addr %s26, 8
          %s210 = scalar_lea.hbm %s1, %s209
          %s212 = sshll.u32 %s210, 4
          %s213 = int_to_ptr.hbm [resolvable:$true] %s212
          %s214 = sshll.u32 %s206, 4
          %s215 = int_to_ptr.vmem [resolvable:$true] %s214
          %217 = dma.hbm_to_vmem [thread:$0]  %s213, 128, %s215, %s203
        $region24: #{tpu_custom_call.1} parent=15 // pred_fallthru
          _
        // Predicated region
        $region25: #{tpu_custom_call.1} parent=15 // pred_check
          %p218 = pneg %p103
        $region26: #{tpu_custom_call.1} parent=15 // pred_check_branch
          %220 = sbr.rel (%p218) target = $region28
        $region27: #{tpu_custom_call.1} parent=15 // pred_region
          %s221 = sand.u32 %s19, 1
          %s222 = scalar_lea.sflag [#allocation11], %s221
          %s223 = sand.u32 %s93, 1
          %s224 = smul.addr %s223, 8
          %s225 = scalar_lea.vmem [#allocation12], %s224
          %227 = vsyncadd %s222, 0
          %s228 = smul.addr %s27, 8
          %s229 = scalar_lea.hbm %s2, %s228
          %s231 = sshll.u32 %s229, 4
          %s232 = int_to_ptr.hbm [resolvable:$true] %s231
          %s233 = sshll.u32 %s225, 4
          %s234 = int_to_ptr.vmem [resolvable:$true] %s233
          %236 = dma.hbm_to_vmem [thread:$0]  %s232, 128, %s234, %s222
        $region28: #{tpu_custom_call.1} parent=15 // pred_fallthru
          _
        // Predicated region
        $region29: #{tpu_custom_call.1} parent=15 // pred_check
          %p237 = pneg %p129
        $region30: #{tpu_custom_call.1} parent=15 // pred_check_branch
          %239 = sbr.rel (%p237) target = $region32
        $region31: #{tpu_custom_call.1} parent=15 // pred_region
          %s240 = sand.u32 %s119, 1
          %s241 = scalar_lea.sflag [#allocation14], %s240
          %s242 = sand.u32 %s119, 1
          %s243 = smul.addr %s242, 8
          %s244 = scalar_lea.vmem [#allocation13], %s243
          %246 = vsyncadd %s241, 0
          %s247 = smul.addr %s27, 8
          %s248 = scalar_lea.hbm %s3, %s247
          %s250 = sshll.u32 %s248, 4
          %s251 = int_to_ptr.hbm [resolvable:$true] %s250
          %s252 = sshll.u32 %s244, 4
          %s253 = int_to_ptr.vmem [resolvable:$true] %s252
          %255 = dma.hbm_to_vmem [thread:$0]  %s251, 128, %s253, %s241
        $region32: #{tpu_custom_call.1} parent=15 // pred_fallthru
          _
      $region16: #{tpu_custom_call.1} parent=5 // pred_fallthru
        _
      %p256 = scmp.le.s32.totalorder 1, %s19
      %p257 = scmp.lt.s32.totalorder %s19, 5
      %p258 = pnand %p256, %p257
      %p259 = pneg %p258
      // Predicated region
      $region33: #{tpu_custom_call.1} parent=5 // pred_check
        _
      $region34: #{tpu_custom_call.1} parent=5 // pred_check_branch
        %261 = sbr.rel (%p258) target = $region36
      $region35: #{tpu_custom_call.1} parent=5 // pred_region
        %s262 = ssub.s32 %s19, 1
        %s263 = sand.u32 %s44, 1
        %s264 = scalar_lea.sflag [#allocation9], %s263
        %s265 = sand.u32 %s44, 1
        %s266 = smul.addr %s265, 8
        %s267 = scalar_lea.vmem [#allocation8], %s266
        // Predicated region
        $region37: #{tpu_custom_call.1} parent=35 // pred_check
          %p268 = pneg %p57
        $region38: #{tpu_custom_call.1} parent=35 // pred_check_branch
          %270 = sbr.rel (%p268) target = $region40
        $region39: #{tpu_custom_call.1} parent=35 // pred_region
          %272 = dma.done %s264, 128
        $region40: #{tpu_custom_call.1} parent=35 // pred_fallthru
          _
        %s273 = sand.u32 %s24, 1
        %s274 = scalar_lea.sflag [#allocation11], %s273
        %s275 = sand.u32 %s70, 1
        %s276 = smul.addr %s275, 8
        %s277 = scalar_lea.vmem [#allocation10], %s276
        // Predicated region
        $region41: #{tpu_custom_call.1} parent=35 // pred_check
          %p278 = pneg %p83
        $region42: #{tpu_custom_call.1} parent=35 // pred_check_branch
          %280 = sbr.rel (%p278) target = $region44
        $region43: #{tpu_custom_call.1} parent=35 // pred_region
          %282 = dma.done %s274, 128
        $region44: #{tpu_custom_call.1} parent=35 // pred_fallthru
          _
        %s283 = sand.u32 %s24, 1
        %s284 = scalar_lea.sflag [#allocation11], %s283
        %s285 = sand.u32 %s96, 1
        %s286 = smul.addr %s285, 8
        %s287 = scalar_lea.vmem [#allocation12], %s286
        // Predicated region
        $region45: #{tpu_custom_call.1} parent=35 // pred_check
          %p288 = pneg %p109
        $region46: #{tpu_custom_call.1} parent=35 // pred_check_branch
          %290 = sbr.rel (%p288) target = $region48
        $region47: #{tpu_custom_call.1} parent=35 // pred_region
          %292 = dma.done %s284, 128
        $region48: #{tpu_custom_call.1} parent=35 // pred_fallthru
          _
        %s293 = sand.u32 %s122, 1
        %s294 = scalar_lea.sflag [#allocation14], %s293
        %s295 = sand.u32 %s122, 1
        %s296 = smul.addr %s295, 8
        %s297 = scalar_lea.vmem [#allocation13], %s296
        // Predicated region
        $region49: #{tpu_custom_call.1} parent=35 // pred_check
          %p298 = pneg %p135
        $region50: #{tpu_custom_call.1} parent=35 // pred_check_branch
          %300 = sbr.rel (%p298) target = $region52
        $region51: #{tpu_custom_call.1} parent=35 // pred_region
          %302 = dma.done %s294, 128
        $region52: #{tpu_custom_call.1} parent=35 // pred_fallthru
          _
        %s303 = sand.u32 %s44, 1
        %s304 = scalar_lea.sflag [#allocation9], %s303
        %s305 = sand.u32 %s44, 1
        %s306 = smul.addr %s305, 8
        %s307 = scalar_lea.vmem [#allocation8], %s306
        %p308 = pneg %p57
        %p309 = pneg %p54
        %s310 = sand.u32 %s24, 1
        %s311 = scalar_lea.sflag [#allocation11], %s310
        %s312 = sand.u32 %s70, 1
        %s313 = smul.addr %s312, 8
        %s314 = scalar_lea.vmem [#allocation10], %s313
        %p315 = pneg %p83
        %p316 = pneg %p80
        %s317 = sand.u32 %s24, 1
        %s318 = scalar_lea.sflag [#allocation11], %s317
        %s319 = sand.u32 %s96, 1
        %s320 = smul.addr %s319, 8
        %s321 = scalar_lea.vmem [#allocation12], %s320
        %p322 = pneg %p109
        %p323 = pneg %p106
        %s324 = sand.u32 %s122, 1
        %s325 = scalar_lea.sflag [#allocation14], %s324
        %s326 = sand.u32 %s122, 1
        %s327 = smul.addr %s326, 8
        %s328 = scalar_lea.vmem [#allocation13], %s327
        %p329 = pneg %p135
        %p330 = pneg %p132
        %p331 = pneg %p161
        %p332 = pneg %p158
        %p333 = scmp.lt.s32.totalorder %s28, 1
        %s334 = scalar_select %p333, %s28, 1
        %s335 = scalar_lea.vmem %s4, %s334
        %p336 = scmp.lt.s32.totalorder %s28, 1
        %s337 = scalar_select %p336, %s28, 1
        %s338 = scalar_lea.vmem %s4, %s337
        %p339 = scmp.eq.s32.totalorder %s29, 0
        // Predicated region
        $region53: #{tpu_custom_call.1} parent=35 // pred_check
          %p340 = pneg %p339
        $region54: #{tpu_custom_call.1} parent=35 // pred_check_branch
          %342 = sbr.rel (%p340) target = $region56
        $region55: #{tpu_custom_call.1} parent=35 // pred_region
          %v343 = vld [vmem:[%s267] sm:$0xff]
          %v344 = vmul.f32 %v343, 2.0
          %345 = vst [vmem:[#allocation2] sm:$0xff] %v344
          %v346 = vld [vmem:[%s277] sm:$0xff]
          %v347 = vmul.f32 %v346, 2.0
          %348 = vst [vmem:[#allocation3] sm:$0xff] %v347
          %vm349 = vcmask 7168
          %350 = vst.msk [vmem:[#allocation4] sm:$0xff] %vm349, -1e+30
          %351 = vst.msk [vmem:[#allocation5] sm:$0xff] %vm349, 0.0
          %352 = vst.msk [vmem:[#allocation6] sm:$0xff] %vm349, -1e+30
          %353 = vst.msk [vmem:[#allocation7] sm:$0xff] %vm349, 0.0
        $region56: #{tpu_custom_call.1} parent=35 // pred_fallthru
          _
        %v354 = vld [vmem:[#allocation2] sm:$0xff]
        %v355 = vld [vmem:[#allocation3] sm:$0xff]
        %v356 = vld [vmem:[%s287] sm:$0xff]
        %v357 = vld [vmem:[%s297] sm:$0xff]
        %v358 = vlaneseq
        %v359 = vand.u32 %v358, 127
        %v360 = vlaneseq
        %v361 = vshrl.u32 %v360, 7
        %s362 = smul.u32 %s28, 8
        %s363 = smul.u32 %s29, 8
        %s364 = ssub.s32 %s362, %s363
        %v365 = vstv %s364
        %v366 = vadd.s32 %v361, %v365
        %vm367 = vcmp.eq.s32.totalorder %v366, %v359
        %368 = vmatpush.xpose.msra.mxu0 0.0
        %369 = vmatpush.xpose.msra.mxu0 0.0
        %370 = vmatpush.xpose.msra.mxu0 0.0
        %371 = vmatpush.xpose.msra.mxu0 0.0
        %372 = vmatpush.xpose.msra.mxu0 0.0
        %373 = vmatpush.xpose.msra.mxu0 0.0
        %374 = vmatpush.xpose.msra.mxu0 0.0
        %375 = vmatpush.xpose.msra.mxu0 0.0
        %376 = vmatpush.xpose.msra.mxu0 0.0
        %377 = vmatpush.xpose.msra.mxu0 0.0
        %378 = vmatpush.xpose.msra.mxu0 0.0
        %379 = vmatpush.xpose.msra.mxu0 0.0
        %380 = vmatpush.xpose.msra.mxu0 0.0
        %381 = vmatpush.xpose.msra.mxu0 0.0
        %382 = vmatpush.xpose.msra.mxu0 0.0
        %383 = vmatpush.xpose.msra.mxu0 %v356
        %384 = vmatmul.f32.gmra.mxu0 %v354
        %v385 = vpop.f32.mrf.mxu0
        %v386 = vadd.f32 0.0, %v385
        %387 = vdwg.mxu0
        %v388 = vsel %vm367, -1e+30, %v386
        %389 = vmatpush.xpose.msra.mxu0 0.0
        %390 = vmatpush.xpose.msra.mxu0 0.0
        %391 = vmatpush.xpose.msra.mxu0 0.0
        %392 = vmatpush.xpose.msra.mxu0 0.0
        %393 = vmatpush.xpose.msra.mxu0 0.0
        %394 = vmatpush.xpose.msra.mxu0 0.0
        %395 = vmatpush.xpose.msra.mxu0 0.0
        %396 = vmatpush.xpose.msra.mxu0 0.0
        %397 = vmatpush.xpose.msra.mxu0 0.0
        %398 = vmatpush.xpose.msra.mxu0 0.0
        %399 = vmatpush.xpose.msra.mxu0 0.0
        %400 = vmatpush.xpose.msra.mxu0 0.0
        %401 = vmatpush.xpose.msra.mxu0 0.0
        %402 = vmatpush.xpose.msra.mxu0 0.0
        %403 = vmatpush.xpose.msra.mxu0 0.0
        %404 = vmatpush.xpose.msra.mxu0 %v357
        %405 = vmatmul.f32.gmra.mxu0 %v354
        %v406 = vpop.f32.mrf.mxu0
        %v407 = vadd.f32 0.0, %v406
        %408 = vdwg.mxu0
        %v409 = vld [vmem:[#allocation4] sm:$0xff]
        %v410 = vmax.f32 %v388, %v407
        %vm411 = vcmask 64512
        %v412 = vsel %vm411, %v410, -inf
        %413 = vmax.xlane.f32.xlu0 %v412
        %v414 = vpop.xlane.xlu0 %413
        %v415 = vmax.f32 %v409, %v414
        %v416 = vsub.f32 %v409, %v415
        %v417 = vmul.f32 %v416, 1.442695
        %v418 = vpow.pop %v417
        %420 = vset.pattern.permute.xlu0 0
        %421 = vperm.xlu0 %420, %v415
        %v422 = vpop.permute.xlu0 %421
        %v424 = vsub.f32 %v388, %v422
        %v425 = vmul.f32 %v424, 1.442695
        %v426 = vpow.pop %v425
        %v427 = vsub.f32 %v407, %v422
        %v428 = vmul.f32 %v427, 1.442695
        %v429 = vpow.pop %v428
        %v430 = vadd.f32 %v426, %v429
        %v431 = vsel %vm411, %v430, 0.0
        %432 = vadd.xlane.f32.xlu0 %v431
        %v433 = vpop.xlane.xlu0 %432
        %v434 = vld [vmem:[#allocation5] sm:$0xff]
        %v435 = vmul.f32 %v418, %v434
        %v436 = vadd.f32 %v435, %v433
        %vm437 = vcmask 7168
        %438 = vst.msk [vmem:[#allocation5] sm:$0xff] %vm437, %v436
        %439 = vst.msk [vmem:[#allocation4] sm:$0xff] %vm437, %v415
        %440 = vmatpush.xpose.msra.mxu0 0.0
        %441 = vmatpush.xpose.msra.mxu0 0.0
        %442 = vmatpush.xpose.msra.mxu0 0.0
        %443 = vmatpush.xpose.msra.mxu0 0.0
        %444 = vmatpush.xpose.msra.mxu0 0.0
        %445 = vmatpush.xpose.msra.mxu0 0.0
        %446 = vmatpush.xpose.msra.mxu0 0.0
        %447 = vmatpush.xpose.msra.mxu0 0.0
        %448 = vmatpush.xpose.msra.mxu0 0.0
        %449 = vmatpush.xpose.msra.mxu0 0.0
        %450 = vmatpush.xpose.msra.mxu0 0.0
        %451 = vmatpush.xpose.msra.mxu0 0.0
        %452 = vmatpush.xpose.msra.mxu0 0.0
        %453 = vmatpush.xpose.msra.mxu0 0.0
        %454 = vmatpush.xpose.msra.mxu0 0.0
        %455 = vmatpush.xpose.msra.mxu0 %v357
        %456 = vmatmul.f32.gmra.mxu0 %v355
        %v457 = vpop.f32.mrf.mxu0
        %v458 = vadd.f32 0.0, %v457
        %459 = vdwg.mxu0
        %v460 = vsel %vm367, -1e+30, %v458
        %461 = vmatpush.xpose.msra.mxu0 0.0
        %462 = vmatpush.xpose.msra.mxu0 0.0
        %463 = vmatpush.xpose.msra.mxu0 0.0
        %464 = vmatpush.xpose.msra.mxu0 0.0
        %465 = vmatpush.xpose.msra.mxu0 0.0
        %466 = vmatpush.xpose.msra.mxu0 0.0
        %467 = vmatpush.xpose.msra.mxu0 0.0
        %468 = vmatpush.xpose.msra.mxu0 0.0
        %469 = vmatpush.xpose.msra.mxu0 0.0
        %470 = vmatpush.xpose.msra.mxu0 0.0
        %471 = vmatpush.xpose.msra.mxu0 0.0
        %472 = vmatpush.xpose.msra.mxu0 0.0
        %473 = vmatpush.xpose.msra.mxu0 0.0
        %474 = vmatpush.xpose.msra.mxu0 0.0
        %475 = vmatpush.xpose.msra.mxu0 0.0
        %476 = vmatpush.xpose.msra.mxu0 %v356
        %477 = vmatmul.f32.gmra.mxu0 %v355
        %v478 = vpop.f32.mrf.mxu0
        %v479 = vadd.f32 0.0, %v478
        %480 = vdwg.mxu0
        %v481 = vld [vmem:[#allocation6] sm:$0xff]
        %v482 = vmax.f32 %v460, %v479
        %v483 = vsel %vm411, %v482, -inf
        %484 = vmax.xlane.f32.xlu0 %v483
        %v485 = vpop.xlane.xlu0 %484
        %v486 = vmax.f32 %v481, %v485
        %v487 = vsub.f32 %v481, %v486
        %v488 = vmul.f32 %v487, 1.442695
        %v489 = vpow.pop %v488
        %491 = vset.pattern.permute.xlu0 0
        %492 = vperm.xlu0 %491, %v486
        %v493 = vpop.permute.xlu0 %492
        %v495 = vsub.f32 %v460, %v493
        %v496 = vmul.f32 %v495, 1.442695
        %v497 = vpow.pop %v496
        %v498 = vsub.f32 %v479, %v493
        %v499 = vmul.f32 %v498, 1.442695
        %v500 = vpow.pop %v499
        %v501 = vadd.f32 %v497, %v500
        %v502 = vsel %vm411, %v501, 0.0
        %503 = vadd.xlane.f32.xlu0 %v502
        %v504 = vpop.xlane.xlu0 %503
        %v505 = vld [vmem:[#allocation7] sm:$0xff]
        %v506 = vmul.f32 %v489, %v505
        %v507 = vadd.f32 %v506, %v504
        %508 = vst.msk [vmem:[#allocation7] sm:$0xff] %vm437, %v507
        %509 = vst.msk [vmem:[#allocation6] sm:$0xff] %vm437, %v486
        %p510 = scmp.eq.s32.totalorder %s29, 1
        // Predicated region
        $region57: #{tpu_custom_call.1} parent=35 // pred_check
          %p511 = pneg %p510
        $region58: #{tpu_custom_call.1} parent=35 // pred_check_branch
          %513 = sbr.rel (%p511) target = $region60
        $region59: #{tpu_custom_call.1} parent=35 // pred_region
          %v514 = vld [vmem:[#allocation4] sm:$0xff]
          %v515 = vld [vmem:[#allocation5] sm:$0xff]
          %v516 = vlog2.pop %v515
          %v517 = vmul.f32 %v516, 0.6931472
          %v518 = vadd.f32 %v514, %v517
          %v519 = vld [vmem:[#allocation6] sm:$0xff]
          %v520 = vld [vmem:[#allocation7] sm:$0xff]
          %v521 = vlog2.pop %v520
          %v522 = vmul.f32 %v521, 0.6931472
          %v523 = vadd.f32 %v519, %v522
          %v524 = vld [vmem:[%s277] sm:$0xff]
          %v525 = vmul.f32 %v354, %v524
          %526 = vadd.xlane.f32.xlu0 %v525
          %v527 = vpop.xlane.xlu0 %526
          %v528 = vadd.f32 %v518, %v523
          %v529 = vmul.f32 %v527, 2.0
          %v530 = vsub.f32 %v528, %v529
          %v531 = vsel %vm437, %v530, 0.0
          %532 = vadd.xlane.f32.xlu0 %v531
          %v533 = vpop.xlane.xlu0 %532
          %v534 = vrot.slane %v533, 4
          %v535 = vadd.f32 %v533, %v534
          %v536 = vrot.slane %v535, 2
          %v537 = vadd.f32 %v535, %v536
          %v538 = vrot.slane %v537, 1
          %v539 = vadd.f32 %v537, %v538
          %s540 = vtos %v539
          %v541 = vstv %s540
          %vm542 = vcmask 0
          %543 = vst.msk [vmem:[%s338] sm:$0x1] %vm542, %v541
        $region60: #{tpu_custom_call.1} parent=35 // pred_fallthru
          _
        %p544 = scmp.lt.s32.totalorder %s28, 1
        %s545 = scalar_select %p544, %s28, 1
        %s546 = scalar_lea.vmem %s4, %s545
        // Predicated region
        $region61: #{tpu_custom_call.1} parent=35 // pred_check
          %p547 = pneg %p158
        $region62: #{tpu_custom_call.1} parent=35 // pred_check_branch
          %549 = sbr.rel (%p547) target = $region64
        $region63: #{tpu_custom_call.1} parent=35 // pred_region
          _
        $region64: #{tpu_custom_call.1} parent=35 // pred_fallthru
          _
      $region36: #{tpu_custom_call.1} parent=5 // pred_fallthru
        _
      %p550 = scmp.le.s32.totalorder 2, %s19
      // Predicated region
      $region65: #{tpu_custom_call.1} parent=5 // pred_check
        %p551 = pneg %p550
      $region66: #{tpu_custom_call.1} parent=5 // pred_check_branch
        %553 = sbr.rel (%p551) target = $region68
      $region67: #{tpu_custom_call.1} parent=5 // pred_region
        %s554 = ssub.s32 %s19, 2
        // Predicated region
        $region69: #{tpu_custom_call.1} parent=67 // pred_check
          %p555 = pneg %p164
        $region70: #{tpu_custom_call.1} parent=67 // pred_check_branch
          %557 = sbr.rel (%p555) target = $region72
        $region71: #{tpu_custom_call.1} parent=67 // pred_region
          %p558 = scmp.lt.s32.totalorder %s30, 1
          %s559 = scalar_select %p558, %s30, 1
          %s560 = scalar_lea.vmem %s4, %s559
        $region72: #{tpu_custom_call.1} parent=67 // pred_fallthru
          _
      $region68: #{tpu_custom_call.1} parent=5 // pred_fallthru
        _
    $region6: #{tpu_custom_call.1} parent=1 // loop_footer
      %s23 = sadd.s32 1, %s19
    $region7: #{tpu_custom_call.1} parent=1 // loop_footer_branch
      %18 = sbr.rel target = $region3
    $region8: #{tpu_custom_call.1} parent=1 // loop_exit
      _
    %561 = vsyncpa [#allocation9], 1
    %s562 = scalar_lea.sflag [#allocation9], 1
    %563 = vsyncpa %s562, 1
    %564 = vsyncpa [#allocation11], 1
    %s565 = scalar_lea.sflag [#allocation11], 1
    %566 = vsyncpa %s565, 1
    %567 = vsyncpa [#allocation14], 1
    %s568 = scalar_lea.sflag [#allocation14], 1
    %569 = vsyncpa %s568, 1

</llo_original>
